<compile_context>
chip_gen: v7x
topology: tpu7x:2x2x1
jax: 0.10.0
libtpu: 0.0.40
codegen_flags: <defaults>
</compile_context>

<pallas_src>
import functools
import math

import jax
import jax.numpy as jnp
from jax import lax
from jax.experimental import pallas as pl
from jax.experimental.pallas import tpu as pltpu


_BITS_RANGE = 1 << 24  # random ints drawn uniformly from [0, 2**24)


def _keep_threshold(keep_prob):
    return int(round(keep_prob * _BITS_RANGE))


def _pick_tile_rows(n_rows, bytes_per_row, budget_bytes=4 << 20):
    """Largest row tile (multiple of 8, <= 1024) whose block set fits the budget."""
    max_rows = (budget_bytes // max(bytes_per_row, 1)) // 8 * 8
    max_rows = max(8, min(max_rows, 1024))
    return n_rows if n_rows <= max_rows else max_rows


def _compiler_params():
    cp_cls = getattr(pltpu, "CompilerParams", None) or getattr(
        pltpu, "TPUCompilerParams", None
    )
    if cp_cls is None:
        return None
    try:
        return cp_cls(dimension_semantics=("parallel",))
    except TypeError:
        return None


def _maybe_cost_estimate(flops, bytes_accessed):
    ce_cls = getattr(pl, "CostEstimate", None)
    if ce_cls is None:
        return None
    return ce_cls(flops=flops, transcendentals=0, bytes_accessed=bytes_accessed)


def _fused_dropout_kernel(s_ref, sbits_ref, v_ref, vbits_ref, so_ref, vo_ref,
                          *, thresh, inv_keep, ncomp):
    # --- scalar channels: independent per-element mask, 1/keep folded in -----
    s_scale = jnp.where(sbits_ref[...] < thresh, inv_keep, 0.0)
    so_ref[...] = (s_ref[...] * s_scale).astype(so_ref.dtype)

    # --- vector channels: one mask per channel, shared over ncomp components -
    ch_mask = (vbits_ref[...] < thresh).astype(jnp.float32)          # (t, NV) exact 0/1
    nv = ch_mask.shape[-1]
    # Interleaved expansion (t, NV) -> (t, NV*ncomp) via a 0/1 expansion matrix
    # on the MXU (lane-dense output, no reshape of a (..., 3) minor dim).
    row = lax.broadcasted_iota(jnp.int32, (nv, nv * ncomp), 0)
    col = lax.broadcasted_iota(jnp.int32, (nv, nv * ncomp), 1)
    expand = ((col >= row * ncomp) & (col < row * ncomp + ncomp)).astype(jnp.float32)
    mask3 = jnp.dot(ch_mask, expand, preferred_element_type=jnp.float32)  # exact 0/1
    vo_ref[...] = (v_ref[...] * (mask3 * inv_keep)).astype(vo_ref.dtype)


def _scalar_dropout_kernel(x_ref, bits_ref, o_ref, *, thresh, inv_keep):
    scale = jnp.where(bits_ref[...] < thresh, inv_keep, 0.0)
    o_ref[...] = (x_ref[...] * scale).astype(o_ref.dtype)


def _common_call_kwargs(flops, bytes_accessed):
    kwargs = {}
    cp = _compiler_params()
    if cp is not None:
        kwargs["compiler_params"] = cp
    ce = _maybe_cost_estimate(flops, bytes_accessed)
    if ce is not None:
        kwargs["cost_estimate"] = ce
    return kwargs


def _fused_dropout(s, v, key, keep_prob):
    ns = s.shape[-1]
    nv, ncomp = v.shape[-2], v.shape[-1]
    rows = math.prod(s.shape[:-1])
    if rows != math.prod(v.shape[:-2]):
        raise ValueError("s and V must share their leading (node) dimensions")

    s2 = s.reshape(rows, ns)
    v2 = v.reshape(rows, nv * ncomp)            # lane-dense 2-D view of the vectors

    ks, kv = jax.random.split(key)
    s_bits = jax.random.randint(ks, (rows, ns), 0, _BITS_RANGE, dtype=jnp.int32)
    v_bits = jax.random.randint(kv, (rows, nv), 0, _BITS_RANGE, dtype=jnp.int32)

    thresh = _keep_threshold(keep_prob)
    inv_keep = 1.0 / keep_prob

    itemsize = max(s.dtype.itemsize, v.dtype.itemsize)
    bytes_per_row = (2 * ns + 2 * nv * ncomp) * itemsize + (ns + nv) * 4
    tile_r = _pick_tile_rows(rows, bytes_per_row)
    grid = (pl.cdiv(rows, tile_r),)

    kernel = functools.partial(
        _fused_dropout_kernel, thresh=thresh, inv_keep=inv_keep, ncomp=ncomp)

    call_kwargs = _common_call_kwargs(
        flops=s2.size + 3 * v2.size,
        bytes_accessed=2 * (s2.size + v2.size) * itemsize
        + (s_bits.size + v_bits.size) * 4,
    )

    s_out, v_out = pl.pallas_call(
        kernel,
        grid=grid,
        in_specs=(
            pl.BlockSpec((tile_r, ns), lambda i: (i, 0)),
            pl.BlockSpec((tile_r, ns), lambda i: (i, 0)),
            pl.BlockSpec((tile_r, nv * ncomp), lambda i: (i, 0)),
            pl.BlockSpec((tile_r, nv), lambda i: (i, 0)),
        ),
        out_specs=(
            pl.BlockSpec((tile_r, ns), lambda i: (i, 0)),
            pl.BlockSpec((tile_r, nv * ncomp), lambda i: (i, 0)),
        ),
        out_shape=(
            jax.ShapeDtypeStruct((rows, ns), s.dtype),
            jax.ShapeDtypeStruct((rows, nv * ncomp), v.dtype),
        ),
        **call_kwargs,
    )(s2, s_bits, v2, v_bits)

    return s_out.reshape(s.shape), v_out.reshape(v.shape)


def _scalar_dropout(x, key, keep_prob):
    c = x.shape[-1]
    rows = math.prod(x.shape[:-1]) if x.ndim > 1 else 1
    x2 = x.reshape(rows, c)
    bits = jax.random.randint(key, (rows, c), 0, _BITS_RANGE, dtype=jnp.int32)

    thresh = _keep_threshold(keep_prob)
    inv_keep = 1.0 / keep_prob

    bytes_per_row = c * (2 * x.dtype.itemsize + 4)
    tile_r = _pick_tile_rows(rows, bytes_per_row)
    grid = (pl.cdiv(rows, tile_r),)

    kernel = functools.partial(
        _scalar_dropout_kernel, thresh=thresh, inv_keep=inv_keep)

    call_kwargs = _common_call_kwargs(
        flops=x2.size,
        bytes_accessed=2 * x2.size * x.dtype.itemsize + bits.size * 4,
    )

    out = pl.pallas_call(
        kernel,
        grid=grid,
        in_specs=(
            pl.BlockSpec((tile_r, c), lambda i: (i, 0)),
            pl.BlockSpec((tile_r, c), lambda i: (i, 0)),
        ),
        out_specs=pl.BlockSpec((tile_r, c), lambda i: (i, 0)),
        out_shape=jax.ShapeDtypeStruct((rows, c), x.dtype),
        **call_kwargs,
    )(x2, bits)
    return out.reshape(x.shape)


def gvp_dropout(x, drop_rate, *, key=None, seed=0, training=True):
    """Pallas equivalent of gvp.Dropout.forward.

    x: either a single array (scalar channels) or a tuple (s, V) with
       s: (..., NS) and V: (..., NV, 3).
    """
    if not training or drop_rate == 0.0:
        return x
    if key is None:
        key = jax.random.PRNGKey(seed)
    keep_prob = 1.0 - float(drop_rate)
    if not isinstance(x, (tuple, list)):
        return _scalar_dropout(x, key, keep_prob)
    s, v = x
    return _fused_dropout(s, v, key, keep_prob)


if __name__ == "__main__":
    key = jax.random.PRNGKey(0)
    ks, kv, kd = jax.random.split(key, 3)

    N, NS, NV = 8, 32, 16
    s = jax.random.normal(ks, (N, NS), dtype=jnp.float32)
    v = jax.random.normal(kv, (N, NV, 3), dtype=jnp.float32)

    drop_rate = 0.25
    s_out, v_out = gvp_dropout((s, v), drop_rate, key=kd, training=True)
    s_out = jax.block_until_ready(s_out)
    v_out = jax.block_until_ready(v_out)

    keep_prob = 1.0 - drop_rate
    # Surviving scalar elements are exactly scaled copies of the input.
    s_ratio = jnp.where(s_out != 0.0, s_out / s, 1.0 / keep_prob)
    assert jnp.allclose(s_ratio, 1.0 / keep_prob, atol=1e-5), "scalar scaling wrong"
    # Vector channels are dropped (or kept) as whole 3-vectors.
    v_unit = jnp.all(v_out == 0.0, axis=-1) | jnp.all(v_out != 0.0, axis=-1)
    assert bool(jnp.all(v_unit)), "vector channel not dropped as a unit"
    v_ratio = jnp.where(v_out != 0.0, v_out / v, 1.0 / keep_prob)
    assert jnp.allclose(v_ratio, 1.0 / keep_prob, atol=1e-5), "vector scaling wrong"

    # Single-tensor path (scalar channels only).
    s_only = gvp_dropout(s, drop_rate, key=kd, training=True)
    s_only = jax.block_until_ready(s_only)
    s_only_ratio = jnp.where(s_only != 0.0, s_only / s, 1.0 / keep_prob)
    assert jnp.allclose(s_only_ratio, 1.0 / keep_prob, atol=1e-5), "s-only scaling wrong"

    # Eval mode: identity.
    s_eval, v_eval = gvp_dropout((s, v), drop_rate, key=kd, training=False)
    assert jnp.array_equal(s_eval, s) and jnp.array_equal(v_eval, v)

    print("KERNEL_OK")
</pallas_src>

<mosaic_0001>
module attributes {stable_mosaic.version = 11 : i64} {
  func.func @_fused_dropout_kernel(%arg0: i32, %arg1: memref<8x32xf32, #tpu.memory_space<vmem>>, %arg2: memref<8x32xi32, #tpu.memory_space<vmem>>, %arg3: memref<8x48xf32, #tpu.memory_space<vmem>>, %arg4: memref<8x16xi32, #tpu.memory_space<vmem>>, %arg5: memref<8x32xf32, #tpu.memory_space<vmem>>, %arg6: memref<8x48xf32, #tpu.memory_space<vmem>>) attributes {dimension_semantics = [#tpu.dimension_semantics<parallel>], iteration_bounds = array<i64: 1>, scalar_prefetch = 0 : i64, scratch_operands = 0 : i64, tpu.core_type = #tpu.core_type<tc>, window_params = [{transform_indices = @transform_0, window_bounds = array<i64: 8, 32>}, {transform_indices = @transform_1, window_bounds = array<i64: 8, 32>}, {transform_indices = @transform_2, window_bounds = array<i64: 8, 48>}, {transform_indices = @transform_3, window_bounds = array<i64: 8, 16>}, {transform_indices = @transform_4, window_bounds = array<i64: 8, 32>}, {transform_indices = @transform_5, window_bounds = array<i64: 8, 48>}]} {
    %c0 = arith.constant 0 : index
    %c0_0 = arith.constant 0 : index
    %0 = vector.load %arg2[%c0, %c0_0] : memref<8x32xi32, #tpu.memory_space<vmem>>, vector<8x32xi32>
    %c12582912_i32 = arith.constant 12582912 : i32
    %1 = vector.broadcast %c12582912_i32 : i32 to vector<8x32xi32>
    %2 = arith.cmpi slt, %0, %1 : vector<8x32xi32>
    %cst = arith.constant 1.33333337 : f32
    %cst_1 = arith.constant 0.000000e+00 : f32
    %3 = vector.broadcast %cst : f32 to vector<8x32xf32>
    %4 = vector.broadcast %cst_1 : f32 to vector<8x32xf32>
    %5 = arith.select %2, %3, %4 : vector<8x32xi1>, vector<8x32xf32>
    %c0_2 = arith.constant 0 : index
    %c0_3 = arith.constant 0 : index
    %6 = vector.load %arg1[%c0_2, %c0_3] : memref<8x32xf32, #tpu.memory_space<vmem>>, vector<8x32xf32>
    %7 = arith.mulf %6, %5 : vector<8x32xf32>
    %c0_4 = arith.constant 0 : index
    %c0_5 = arith.constant 0 : index
    %8 = vector.load %arg5[%c0_4, %c0_5] : memref<8x32xf32, #tpu.memory_space<vmem>>, vector<8x32xf32>
    tpu.vector_store %arg5[%c0_4, %c0_5], %7 {strides = array<i32>} : memref<8x32xf32, #tpu.memory_space<vmem>>, vector<8x32xf32>,
    %c0_6 = arith.constant 0 : index
    %c0_7 = arith.constant 0 : index
    %9 = vector.load %arg4[%c0_6, %c0_7] : memref<8x16xi32, #tpu.memory_space<vmem>>, vector<8x16xi32>
    %c12582912_i32_8 = arith.constant 12582912 : i32
    %10 = vector.broadcast %c12582912_i32_8 : i32 to vector<8x16xi32>
    %11 = arith.cmpi slt, %9, %10 : vector<8x16xi32>
    %12 = arith.extui %11 : vector<8x16xi1> to vector<8x16xi32>
    %13 = arith.sitofp %12 : vector<8x16xi32> to vector<8x16xf32>
    %14 = tpu.iota {dimensions = array<i32: 0>} : vector<16x48xi32>
    %15 = tpu.iota {dimensions = array<i32: 1>} : vector<16x48xi32>
    %c3_i32 = arith.constant 3 : i32
    %16 = vector.broadcast %c3_i32 : i32 to vector<16x48xi32>
    %17 = arith.muli %14, %16 : vector<16x48xi32>
    %18 = arith.cmpi sge, %15, %17 : vector<16x48xi32>
    %c3_i32_9 = arith.constant 3 : i32
    %19 = vector.broadcast %c3_i32_9 : i32 to vector<16x48xi32>
    %20 = arith.muli %14, %19 : vector<16x48xi32>
    %c3_i32_10 = arith.constant 3 : i32
    %21 = vector.broadcast %c3_i32_10 : i32 to vector<16x48xi32>
    %22 = arith.addi %20, %21 : vector<16x48xi32>
    %23 = arith.cmpi slt, %15, %22 : vector<16x48xi32>
    %24 = arith.andi %18, %23 : vector<16x48xi1>
    %25 = arith.extui %24 : vector<16x48xi1> to vector<16x48xi32>
    %26 = arith.sitofp %25 : vector<16x48xi32> to vector<16x48xf32>
    %cst_11 = arith.constant dense<0.000000e+00> : vector<8x48xf32>
    %27 = tpu.matmul %13, %26, %cst_11 {dimension_numbers = #tpu.dot_dimension_numbers<[1], [0], [0], [1], [0, 0, 1, 1], [], []>} : vector<8x16xf32>, vector<16x48xf32>, vector<8x48xf32> -> vector<8x48xf32>
    %c0_12 = arith.constant 0 : index
    %c0_13 = arith.constant 0 : index
    %28 = vector.load %arg3[%c0_12, %c0_13] : memref<8x48xf32, #tpu.memory_space<vmem>>, vector<8x48xf32>
    %cst_14 = arith.constant 1.33333337 : f32
    %29 = vector.broadcast %cst_14 : f32 to vector<8x48xf32>
    %30 = arith.mulf %27, %29 : vector<8x48xf32>
    %31 = arith.mulf %28, %30 : vector<8x48xf32>
    %c0_15 = arith.constant 0 : index
    %c0_16 = arith.constant 0 : index
    %32 = vector.load %arg6[%c0_15, %c0_16] : memref<8x48xf32, #tpu.memory_space<vmem>>, vector<8x48xf32>
    tpu.vector_store %arg6[%c0_15, %c0_16], %31 {strides = array<i32>} : memref<8x48xf32, #tpu.memory_space<vmem>>, vector<8x48xf32>,
    return
  }
  func.func @transform_0(%arg0: i32) -> (i32, i32) {
    %c0_i32 = arith.constant 0 : i32
    %c0_i32_0 = arith.constant 0 : i32
    return %arg0, %c0_i32 : i32, i32
  }
  func.func @transform_1(%arg0: i32) -> (i32, i32) {
    %c0_i32 = arith.constant 0 : i32
    %c0_i32_0 = arith.constant 0 : i32
    return %arg0, %c0_i32 : i32, i32
  }
  func.func @transform_2(%arg0: i32) -> (i32, i32) {
    %c0_i32 = arith.constant 0 : i32
    %c0_i32_0 = arith.constant 0 : i32
    return %arg0, %c0_i32 : i32, i32
  }
  func.func @transform_3(%arg0: i32) -> (i32, i32) {
    %c0_i32 = arith.constant 0 : i32
    %c0_i32_0 = arith.constant 0 : i32
    return %arg0, %c0_i32 : i32, i32
  }
  func.func @transform_4(%arg0: i32) -> (i32, i32) {
    %c0_i32 = arith.constant 0 : i32
    %c0_i32_0 = arith.constant 0 : i32
    return %arg0, %c0_i32 : i32, i32
  }
  func.func @transform_5(%arg0: i32) -> (i32, i32) {
    %c0_i32 = arith.constant 0 : i32
    %c0_i32_0 = arith.constant 0 : i32
    return %arg0, %c0_i32 : i32, i32
  }
}

</mosaic_0001>

<llo_original>
// kernel: tpu_custom_call.1
$region0: #{tpu_custom_call.1}
  #allocation0 [shape = 'u32[]', space=smem, size = 0x4, offset = 0x4, fixed_abs, tag = 'smem constant byte address 0x4 - core index']
  #allocation1 [shape = 'u32[144,128]{1,0:T(1,128)}', space=vmem, size = 0x12000, scoped, tag = 'internal scratch']
  %s0 = inlined_call_operand.hbm [shape: f32[8,32], index: 0, kind: input, shape index: {}]
  %s1 = inlined_call_operand.hbm [shape: s32[8,32], index: 1, kind: input, shape index: {}]
  %s2 = inlined_call_operand.hbm [shape: f32[8,48], index: 2, kind: input, shape index: {}]
  %s3 = inlined_call_operand.vmem [shape: s32[8,16], index: 3, kind: input, shape index: {}]
  %s4 = inlined_call_operand.hbm [shape: f32[8,32], index: 4, kind: output, shape index: {0}]
  %s5 = inlined_call_operand.hbm [shape: f32[8,48], index: 5, kind: output, shape index: {1}]
  %6 = xla_tuple %s4, %s5
  %s7 = sld [smem:[#allocation0]]
  $region46: #{tpu_custom_call.1} parent=0
    _
  %s9 = ssub.s32 1, %s7
  %s10 = scalar_select 0, %s9, %s7
  $region1: #{tpu_custom_call.1} parent=0
    #allocation2 [shape = 'u8[4096]{0}', space=vmem, size = 0x1000, scoped, tag = 'input window, operand 0, single buffered']
    #allocation3 [shape = 's32[1]{0}', space=sflag, size = 0x4, scoped, tag = 'scoped memory for tpu_custom_call.1']
    #allocation4 [shape = 's32[1]{0}', space=sflag, size = 0x4, scoped, tag = 'scoped memory for tpu_custom_call.1']
    #allocation5 [shape = 'u8[4096]{0}', space=vmem, size = 0x1000, scoped, tag = 'input window, operand 1, single buffered']
    #allocation6 [shape = 's32[1]{0}', space=sflag, size = 0x4, scoped, tag = 'scoped memory for tpu_custom_call.1']
    #allocation7 [shape = 'u8[4096]{0}', space=vmem, size = 0x1000, scoped, tag = 'input window, operand 2, single buffered']
    #allocation8 [shape = 'u8[4096]{0}', space=vmem, size = 0x1000, scoped, tag = 'output window, operand 0, single buffered']
    #allocation9 [shape = 'u8[4096]{0}', space=vmem, size = 0x1000, scoped, tag = 'output window, operand 1, single buffered']
    #allocation10 [shape = 's32[1]{0}', space=sflag, size = 0x4, scoped, tag = 'scoped memory for tpu_custom_call.1']
    %11 = vsyncpa [#allocation3], 0
    %12 = vsyncpa [#allocation6], 0
    %13 = vsyncpa [#allocation4], 0
    %14 = vsyncpa [#allocation10], 0
    // Predicated region
    $region2: #{tpu_custom_call.1} parent=1 // pred_check
      _
    $region3: #{tpu_custom_call.1} parent=1 // pred_check_branch
      %16 = sbr.rel (0) target = $region5
    $region4: #{tpu_custom_call.1} parent=1 // pred_region
      %s18 = ssub.s32 128, 128
      %19 = vsyncadd [#allocation3], %s18
      %s21 = sshll.u32 [#allocation2], 4
      %s22 = int_to_ptr.vmem [resolvable:$true] %s21
      %24 = dma.hbm_to_vmem [thread:$0]  %s0, 128, %s22, [#allocation3]
    $region5: #{tpu_custom_call.1} parent=1 // pred_fallthru
      _
    // Predicated region
    $region6: #{tpu_custom_call.1} parent=1 // pred_check
      _
    $region7: #{tpu_custom_call.1} parent=1 // pred_check_branch
      %26 = sbr.rel (0) target = $region9
    $region8: #{tpu_custom_call.1} parent=1 // pred_region
      %s28 = ssub.s32 128, 128
      %29 = vsyncadd [#allocation6], %s28
      %s31 = sshll.u32 [#allocation5], 4
      %s32 = int_to_ptr.vmem [resolvable:$true] %s31
      %34 = dma.hbm_to_vmem [thread:$0]  %s1, 128, %s32, [#allocation6]
    $region9: #{tpu_custom_call.1} parent=1 // pred_fallthru
      _
    // Predicated region
    $region10: #{tpu_custom_call.1} parent=1 // pred_check
      _
    $region11: #{tpu_custom_call.1} parent=1 // pred_check_branch
      %36 = sbr.rel (0) target = $region13
    $region12: #{tpu_custom_call.1} parent=1 // pred_region
      %s38 = ssub.s32 128, 128
      %39 = vsyncadd [#allocation6], %s38
      %s41 = sshll.u32 [#allocation7], 4
      %s42 = int_to_ptr.vmem [resolvable:$true] %s41
      %44 = dma.hbm_to_vmem [thread:$0]  %s2, 128, %s42, [#allocation6]
    $region13: #{tpu_custom_call.1} parent=1 // pred_fallthru
      _
    // Predicated region
    $region14: #{tpu_custom_call.1} parent=1 // pred_check
      _
    $region15: #{tpu_custom_call.1} parent=1 // pred_check_branch
      %46 = sbr.rel (0) target = $region17
    $region16: #{tpu_custom_call.1} parent=1 // pred_region
      _
    $region17: #{tpu_custom_call.1} parent=1 // pred_fallthru
      _
    // Predicated region
    $region18: #{tpu_custom_call.1} parent=1 // pred_check
      _
    $region19: #{tpu_custom_call.1} parent=1 // pred_check_branch
      %48 = sbr.rel (0) target = $region21
    $region20: #{tpu_custom_call.1} parent=1 // pred_region
      %49 = dma.done [#allocation3], 128
    $region21: #{tpu_custom_call.1} parent=1 // pred_fallthru
      _
    // Predicated region
    $region22: #{tpu_custom_call.1} parent=1 // pred_check
      _
    $region23: #{tpu_custom_call.1} parent=1 // pred_check_branch
      %51 = sbr.rel (0) target = $region25
    $region24: #{tpu_custom_call.1} parent=1 // pred_region
      %52 = dma.done [#allocation6], 128
    $region25: #{tpu_custom_call.1} parent=1 // pred_fallthru
      _
    // Predicated region
    $region26: #{tpu_custom_call.1} parent=1 // pred_check
      _
    $region27: #{tpu_custom_call.1} parent=1 // pred_check_branch
      %54 = sbr.rel (0) target = $region29
    $region28: #{tpu_custom_call.1} parent=1 // pred_region
      %55 = dma.done [#allocation6], 128
    $region29: #{tpu_custom_call.1} parent=1 // pred_fallthru
      _
    %v56 = vld [vmem:[#allocation5] sm:$0xff]
    %vm57 = vcmp.lt.s32.totalorder %v56, 12582912
    %v58 = vsel %vm57, 1.3333334, 0.0
    %v59 = vld [vmem:[#allocation2] sm:$0xff]
    %v60 = vmul.f32 %v59, %v58
    %vm61 = vcmask 261120
    %62 = vst.msk [vmem:[#allocation8] sm:$0xff] %vm61, %v60
    %v63 = vld [vmem:[%s3] sm:$0xff]
    %vm64 = vcmp.lt.s32.totalorder %v63, 12582912
    %v65 = vsel %vm64, 1, 0
    %v66 = vcvt.s32.f32 %v65
    %v67 = vlaneseq
    %v68 = vshrl.u32 %v67, 7
    %v69 = vadd.s32 %v68, 8
    %v70 = vlaneseq
    %v71 = vand.u32 %v70, 127
    %v72 = vmul.u32 %v68, 3
    %v73 = vmul.u32 %v69, 3
    %vm74 = vcmp.ge.s32.totalorder %v71, %v72
    %vm75 = vcmp.ge.s32.totalorder %v71, %v73
    %v76 = vadd.s32 %v72, 3
    %v77 = vadd.s32 %v73, 3
    %vm78 = vcmp.lt.s32.totalorder %v71, %v76
    %vm79 = vcmp.lt.s32.totalorder %v71, %v77
    %vm80 = vmand %vm74, %vm78
    %vm81 = vmand %vm75, %vm79
    %v82 = vsel %vm80, 1, 0
    %v83 = vsel %vm81, 1, 0
    %v84 = vcvt.s32.f32 %v82
    %v85 = vcvt.s32.f32 %v83
    %vm86 = vcmask 130048
    %v88 = vsel %vm86, %v66, 0
    %90 = vmatprep.subr.mxu0 0.0
    %91 = vmatpush1.msra.mxu0 %v84
    %92 = vmatprep.subr.mxu0 0.0
    %93 = vmatpush1.msra.mxu0 %v85
    %94 = vmatprep.subr.mxu0 0.0
    %95 = vmatpush1.msra.mxu0 0.0
    %96 = vmatprep.subr.mxu0 0.0
    %97 = vmatpush1.msra.mxu0 0.0
    %98 = vmatprep.subr.mxu0 0.0
    %99 = vmatpush1.msra.mxu0 0.0
    %100 = vmatprep.subr.mxu0 0.0
    %101 = vmatpush1.msra.mxu0 0.0
    %102 = vmatprep.subr.mxu0 0.0
    %103 = vmatpush1.msra.mxu0 0.0
    %104 = vmatprep.subr.mxu0 0.0
    %105 = vmatpush1.msra.mxu0 0.0
    %106 = vmatprep.subr.mxu0 0.0
    %107 = vmatpush1.msra.mxu0 0.0
    %108 = vmatprep.subr.mxu0 0.0
    %109 = vmatpush1.msra.mxu0 0.0
    %110 = vmatprep.subr.mxu0 0.0
    %111 = vmatpush1.msra.mxu0 0.0
    %112 = vmatprep.subr.mxu0 0.0
    %113 = vmatpush1.msra.mxu0 0.0
    %114 = vmatprep.subr.mxu0 0.0
    %115 = vmatpush1.msra.mxu0 0.0
    %116 = vmatprep.subr.mxu0 0.0
    %117 = vmatpush1.msra.mxu0 0.0
    %118 = vmatprep.subr.mxu0 0.0
    %119 = vmatpush1.msra.mxu0 0.0
    %120 = vmatprep.subr.mxu0 0.0
    %121 = vmatpush1.msra.mxu0 0.0
    %122 = vmatprep.subr.mxu0 0.0
    %123 = vmatpush1.msra.mxu0 0.0
    %124 = vmatprep.subr.mxu0 0.0
    %125 = vmatpush1.msra.mxu0 0.0
    %126 = vmatprep.subr.mxu0 0.0
    %127 = vmatpush1.msra.mxu0 0.0
    %128 = vmatprep.subr.mxu0 0.0
    %129 = vmatpush1.msra.mxu0 0.0
    %130 = vmatprep.subr.mxu0 0.0
    %131 = vmatpush1.msra.mxu0 0.0
    %132 = vmatprep.subr.mxu0 0.0
    %133 = vmatpush1.msra.mxu0 0.0
    %134 = vmatprep.subr.mxu0 0.0
    %135 = vmatpush1.msra.mxu0 0.0
    %136 = vmatprep.subr.mxu0 0.0
    %137 = vmatpush1.msra.mxu0 0.0
    %138 = vmatprep.subr.mxu0 0.0
    %139 = vmatpush1.msra.mxu0 0.0
    %140 = vmatprep.subr.mxu0 0.0
    %141 = vmatpush1.msra.mxu0 0.0
    %142 = vmatprep.subr.mxu0 0.0
    %143 = vmatpush1.msra.mxu0 0.0
    %144 = vmatprep.subr.mxu0 0.0
    %145 = vmatpush1.msra.mxu0 0.0
    %146 = vmatprep.subr.mxu0 0.0
    %147 = vmatpush1.msra.mxu0 0.0
    %148 = vmatprep.subr.mxu0 0.0
    %149 = vmatpush1.msra.mxu0 0.0
    %150 = vmatprep.subr.mxu0 0.0
    %151 = vmatpush1.msra.mxu0 0.0
    %152 = vmatprep.subr.mxu0 0.0
    %153 = vmatpush1.msra.mxu0 0.0
    %154 = vmatprep.mubr.f32.mxu0 0.0
    %155 = vmatmul.mubr.f32.gmra.mrb[0].mxu0 %v88
    %v156 = vpop.f32.mrb[0].mxu0
    %v157 = vadd.f32 0.0, %v156
    %v158 = vpop.f32.mrb[0].mxu0
    %159 = vdwg.mxu0
    %v160 = vld [vmem:[#allocation7] sm:$0xff]
    %v161 = vmul.f32 %v157, 1.3333334
    %v162 = vmul.f32 %v160, %v161
    %vm163 = vcmask 392192
    %164 = vst.msk [vmem:[#allocation9] sm:$0xff] %vm163, %v162
    // Predicated region
    $region30: #{tpu_custom_call.1} parent=1 // pred_check
      _
    $region31: #{tpu_custom_call.1} parent=1 // pred_check_branch
      %166 = sbr.rel (0) target = $region33
    $region32: #{tpu_custom_call.1} parent=1 // pred_region
      %s168 = ssub.s32 128, 128
      %169 = vsyncadd [#allocation4], %s168
      %s171 = sshll.u32 [#allocation8], 4
      %s172 = int_to_ptr.vmem [resolvable:$true] %s171
      %174 = dma.vmem_to_hbm [thread:$0]  %s172, 128, %s4, [#allocation4]
    $region33: #{tpu_custom_call.1} parent=1 // pred_fallthru
      _
    // Predicated region
    $region34: #{tpu_custom_call.1} parent=1 // pred_check
      _
    $region35: #{tpu_custom_call.1} parent=1 // pred_check_branch
      %176 = sbr.rel (0) target = $region37
    $region36: #{tpu_custom_call.1} parent=1 // pred_region
      %s178 = ssub.s32 128, 128
      %179 = vsyncadd [#allocation10], %s178
      %s181 = sshll.u32 [#allocation9], 4
      %s182 = int_to_ptr.vmem [resolvable:$true] %s181
      %184 = dma.vmem_to_hbm [thread:$0]  %s182, 128, %s5, [#allocation10]
    $region37: #{tpu_custom_call.1} parent=1 // pred_fallthru
      _
    // Predicated region
    $region38: #{tpu_custom_call.1} parent=1 // pred_check
      _
    $region39: #{tpu_custom_call.1} parent=1 // pred_check_branch
      %186 = sbr.rel (0) target = $region41
    $region40: #{tpu_custom_call.1} parent=1 // pred_region
      %187 = dma.done [#allocation4], 128
    $region41: #{tpu_custom_call.1} parent=1 // pred_fallthru
      _
    // Predicated region
    $region42: #{tpu_custom_call.1} parent=1 // pred_check
      _
    $region43: #{tpu_custom_call.1} parent=1 // pred_check_branch
      %189 = sbr.rel (0) target = $region45
    $region44: #{tpu_custom_call.1} parent=1 // pred_region
      %190 = dma.done [#allocation10], 128
    $region45: #{tpu_custom_call.1} parent=1 // pred_fallthru
      _
    %191 = vsyncpa [#allocation3], 1
    %192 = vsyncpa [#allocation6], 1
    %193 = vsyncpa [#allocation4], 1
    %194 = vsyncpa [#allocation10], 1

</llo_original>
